<compile_context>
chip_gen: v6e
topology: v6e:2x2x1
jax: 0.10.0
libtpu: 0.0.40
codegen_flags: <defaults>
</compile_context>

<pallas_src>
import functools
import math

import jax
import jax.numpy as jnp
import numpy as np
from jax.experimental import pallas as pl
from jax.experimental.pallas import tpu as pltpu


def _round_up(x, m):
    return (x + m - 1) // m * m


# --------------------- kernel A: fused projection matmuls ------------------- #
def _project_kernel(x_ref, wf_ref, wa_ref, feat_ref, attn_ref):
    # feat = (x -> bf16) @ W_feat_bf16  (f32 accumulate, stored bf16, per-head blocks
    #        zero-padded to CP lanes)
    # attn = x_f32 @ W_attn_f32         (a_src / a_dst logit columns kept in f32 to
    #        avoid amplified rounding in exp())
    xb = x_ref[...].astype(jnp.bfloat16)
    feat_ref[...] = jnp.dot(xb, wf_ref[...],
                            preferred_element_type=jnp.float32).astype(jnp.bfloat16)
    attn_ref[...] = jnp.dot(x_ref[...], wa_ref[...],
                            preferred_element_type=jnp.float32)


def project(x, w_feat, w_attn, *, tile_m):
    N, Din = x.shape
    assert w_feat.shape[0] == Din and w_attn.shape[0] == Din
    HCP = w_feat.shape[1]
    ATT_P = w_attn.shape[1]
    assert N % tile_m == 0
    return pl.pallas_call(
        _project_kernel,
        out_shape=(jax.ShapeDtypeStruct((N, HCP), jnp.bfloat16),
                   jax.ShapeDtypeStruct((N, ATT_P), jnp.float32)),
        grid_spec=pltpu.PrefetchScalarGridSpec(
            num_scalar_prefetch=0,
            grid=(N // tile_m,),
            in_specs=[pl.BlockSpec((tile_m, Din), lambda i: (i, 0)),
                      pl.BlockSpec((Din, HCP), lambda i: (0, 0)),     # resident (bf16)
                      pl.BlockSpec((Din, ATT_P), lambda i: (0, 0))],  # resident (f32)
            out_specs=[pl.BlockSpec((tile_m, HCP), lambda i: (i, 0)),
                       pl.BlockSpec((tile_m, ATT_P), lambda i: (i, 0))],
        ),
        compiler_params=pltpu.CompilerParams(
            dimension_semantics=("parallel",),
            vmem_limit_bytes=64 * 1024 * 1024),
    )(x, w_feat, w_attn)


# ------------------ kernel B: attention + aggregation (tiled) --------------- #
def _gat_attn_kernel(asrc_ref, adst_ref, feat_ref, adj_ref, bias_ref, act_ref,
                     out_ref, *, H, CP, negative_slope, apply_prelu):
    """One tile of TM destination rows of a GATConv layer.

    asrc_ref : (H, N)      a_src for ALL source nodes, pre-transposed to rows (f32)
    adst_ref : (TM, H)     a_dst for this tile's destination nodes (f32)
    feat_ref : (N, H*CP)   bf16 per-head feat blocks, zero-padded to CP lanes each
    adj_ref  : (TM, N)     int8 mask, adj[dst, src] != 0 iff edge src -> dst
    bias_ref : (1, CP)     bias zero-padded to CP lanes
    act_ref  : (1,)        PReLU slope (SMEM scalar)
    out_ref  : (TM, CP)    lane-dense padded output (first C columns valid, rest 0)
    """
    adjm = adj_ref[...] != 0                                  # (TM, N) bool, once/tile
    mask_bias = jnp.where(adjm, jnp.float32(0.0), jnp.float32(-1e30))   # (TM, N) f32
    adst = adst_ref[...]                                      # (TM, H) f32
    TM = adst.shape[0]

    acc = jnp.zeros((TM, CP), jnp.float32)
    for h in range(H):                                        # static unroll over heads
        fh = feat_ref[:, h * CP:(h + 1) * CP]                 # (N, CP) bf16, no cast
        a_s = asrc_ref[h:h + 1, :]                            # (1, N)  lane broadcast
        a_d = adst[:, h:h + 1]                                # (TM, 1) sublane broadcast
        e = a_d + a_s                                         # (TM, N) VPU add
        if negative_slope == 0.0:
            e = jnp.maximum(e, 0.0)                           # leaky_relu, slope 0
        else:
            e = jnp.where(e >= 0.0, e, negative_slope * e)
        e = e + mask_bias                                     # masking AFTER leaky_relu
        m = jnp.max(e, axis=-1, keepdims=True)                # (TM, 1) rowwise max
        p = jnp.exp(e - m)                                    # non-edges underflow to 0
        s = jnp.sum(p, axis=-1, keepdims=True)                # (TM, 1), >= 1
        # isolated dst rows (no incoming edge) have m ~ -1e30 -> force alpha sum to 0
        inv = jnp.where(m > jnp.float32(-1e29),
                        pl.reciprocal(s, approx=True),        # EUP, ~free
                        jnp.float32(0.0))
        pv = jnp.dot(p.astype(jnp.bfloat16), fh,              # MXU, bf16 in / f32 acc
                     preferred_element_type=jnp.float32)      # (TM, CP)
        acc = acc + inv * pv                                  # normalize after matmul

    out = acc * jnp.float32(1.0 / H) + bias_ref[...]          # mean over heads + bias
    if apply_prelu:
        a = act_ref[0]
        out = jnp.where(out >= 0.0, out, a * out)             # PReLU
    out_ref[...] = out


def gat_attention(asrc_t, adst, feat_bf16, adj, bias_p, prelu_a, *, heads, CP,
                  tile_m, negative_slope, apply_prelu):
    N = adj.shape[0]
    H = heads
    HCP = feat_bf16.shape[1]
    assert N % tile_m == 0
    kern = functools.partial(_gat_attn_kernel, H=H, CP=CP,
                             negative_slope=negative_slope,
                             apply_prelu=apply_prelu)
    return pl.pallas_call(
        kern,
        out_shape=jax.ShapeDtypeStruct((N, CP), jnp.float32),
        grid_spec=pltpu.PrefetchScalarGridSpec(
            num_scalar_prefetch=0,
            grid=(N // tile_m,),
            in_specs=[
                pl.BlockSpec((H, N), lambda i: (0, 0)),               # a_src rows (resident)
                pl.BlockSpec((tile_m, H), lambda i: (i, 0)),          # a_dst tile
                pl.BlockSpec((N, HCP), lambda i: (0, 0)),             # bf16 feat (resident)
                pl.BlockSpec((tile_m, N), lambda i: (i, 0)),          # adj tile (int8)
                pl.BlockSpec((1, CP), lambda i: (0, 0)),              # padded bias
                pl.BlockSpec(memory_space=pltpu.MemorySpace.SMEM),    # PReLU slope scalar
            ],
            out_specs=pl.BlockSpec((tile_m, CP), lambda i: (i, 0)),
        ),
        compiler_params=pltpu.CompilerParams(
            dimension_semantics=("parallel",),
            vmem_limit_bytes=64 * 1024 * 1024),
    )(asrc_t, adst, feat_bf16, adj, bias_p, prelu_a)


# --------------------------- layer / module wrappers ------------------------ #
def gat_conv(x, packed, adj, *, negative_slope, tile_m):
    H, CP = packed["heads"], packed["CP"]
    feat_bf16, attn = project(x, packed["w_feat"], packed["w_attn"], tile_m=tile_m)
    asrc_t = attn[:, :H].T                # (H, N) — only remaining (tiny) wrapper glue
    adst = attn[:, H:2 * H]               # (N, H)
    out_p = gat_attention(asrc_t, adst, feat_bf16, adj, packed["bias_p"],
                          packed["prelu_a"], heads=H, CP=CP, tile_m=tile_m,
                          negative_slope=negative_slope,
                          apply_prelu=packed["apply_prelu"])
    return out_p                          # stays CP-lane padded (padded cols are 0)


def gat_forward(params, x, adj_i8, negative_slope=0.0, tile_m=128):
    """GAT.forward (eval mode: feat_drop / attn_drop are identity). head = Identity."""
    # TODO(synk): F.dropout(h, p=feat_drop) skipped -- eval mode (training=False).
    h = x
    for p in params:
        h = gat_conv(h, p["packed"], adj_i8, negative_slope=negative_slope,
                     tile_m=tile_m)
    return h[:, :params[-1]["packed"]["out_channels"]]   # drop lane padding once, at end


# ------------------------------- parameter init ----------------------------- #
def xavier_normal(key, shape, fan_in, fan_out, gain=1.414):
    std = gain * math.sqrt(2.0 / (fan_in + fan_out))
    return (std * jax.random.normal(key, shape)).astype(jnp.float32)


def pack_layer(w, att_src, att_dst, bias, prelu_a, apply_prelu, in_pad=None):
    """Host-side weight packing.

    w_feat (bf16, (in_pad, H*CP)): per-head [W_h | 0-pad to CP] blocks, rows padded
        with zeros to in_pad so the layer can consume the previous layer's CP-padded
        output directly (zero rows x zero cols == no-op).
    w_attn (f32, (in_pad, ATT_P)): col h = W_h @ att_src_h, col H+h = W_h @ att_dst_h,
        remaining columns zero (lane-dense f32 logit matmul).
    """
    w_np = np.asarray(w, np.float32)
    Din = w_np.shape[0]
    H, C = att_src.shape
    CP = _round_up(max(C, 128), 128)
    ATT_P = 128
    assert 2 * H <= ATT_P
    Dp = Din if in_pad is None else in_pad
    assert Dp >= Din
    w_feat = np.zeros((Dp, H * CP), np.float32)
    w_attn = np.zeros((Dp, ATT_P), np.float32)
    for h in range(H):
        wh = w_np[:, h * C:(h + 1) * C]                               # (Din, C)
        w_feat[:Din, h * CP:h * CP + C] = wh
        w_attn[:Din, h] = wh @ np.asarray(att_src[h], np.float32)
        w_attn[:Din, H + h] = wh @ np.asarray(att_dst[h], np.float32)
    bias_p = np.zeros((1, CP), np.float32)
    bias_p[0, :C] = np.asarray(bias, np.float32)
    return dict(w_feat=jnp.asarray(w_feat, jnp.bfloat16),
                w_attn=jnp.asarray(w_attn, jnp.float32),
                bias_p=jnp.asarray(bias_p, jnp.float32),
                prelu_a=prelu_a, heads=H, out_channels=C, CP=CP,
                in_pad=Dp, apply_prelu=apply_prelu)


def init_gat_params(key, in_dim, num_hidden, out_dim, nhead=1, nhead_out=1):
    """Two-layer GAT (num_layers=2, concat_out=False, residual=False, norm=None)."""
    ks = jax.random.split(key, 8)
    params = []
    # layer 0: GATConv(in_dim, num_hidden, nhead), activation=PReLU
    raw0 = dict(
        w=xavier_normal(ks[0], (in_dim, nhead * num_hidden), in_dim, nhead * num_hidden),
        att_src=xavier_normal(ks[1], (nhead, num_hidden), num_hidden, nhead * num_hidden),
        att_dst=xavier_normal(ks[2], (nhead, num_hidden), num_hidden, nhead * num_hidden),
        bias=jnp.zeros((num_hidden,), jnp.float32),
        prelu_a=jnp.full((1,), 0.25, jnp.float32),                     # nn.PReLU default
        heads=nhead, out_channels=num_hidden, apply_prelu=True)
    raw0["packed"] = pack_layer(raw0["w"], raw0["att_src"], raw0["att_dst"],
                                raw0["bias"], raw0["prelu_a"], True, in_pad=None)
    params.append(raw0)
    # layer 1: GATConv(num_hidden*nhead, out_dim, nhead_out), activation=None (encoding=False)
    din1 = num_hidden * 1  # concat_out=False -> previous layer outputs num_hidden
    raw1 = dict(
        w=xavier_normal(ks[3], (din1, nhead_out * out_dim), din1, nhead_out * out_dim),
        att_src=xavier_normal(ks[4], (nhead_out, out_dim), out_dim, nhead_out * out_dim),
        att_dst=xavier_normal(ks[5], (nhead_out, out_dim), out_dim, nhead_out * out_dim),
        bias=jnp.zeros((out_dim,), jnp.float32),
        prelu_a=jnp.full((1,), 0.25, jnp.float32),
        heads=nhead_out, out_channels=out_dim, apply_prelu=False)
    # row-pad layer-1 weights to layer-0's CP so the padded activation feeds it directly
    raw1["packed"] = pack_layer(raw1["w"], raw1["att_src"], raw1["att_dst"],
                                raw1["bias"], raw1["prelu_a"], False,
                                in_pad=raw0["packed"]["CP"])
    params.append(raw1)
    return params


# ------------------------- edge-list reference (f32, jnp) -------------------- #
def ref_layer(x, p, edge_index, negative_slope):
    N = x.shape[0]
    H, C = p["heads"], p["out_channels"]
    src, dst = edge_index[0], edge_index[1]
    feat = (x @ p["w"]).reshape(N, H, C)
    a_src = jnp.sum(feat * p["att_src"][None], -1)            # (N, H)
    a_dst = jnp.sum(feat * p["att_dst"][None], -1)
    alpha = a_src[src] + a_dst[dst]                           # (E, H)
    alpha = jnp.where(alpha >= 0, alpha, negative_slope * alpha)
    amax = jax.ops.segment_max(alpha, dst, num_segments=N)
    alpha = jnp.exp(alpha - amax[dst])
    denom = jax.ops.segment_sum(alpha, dst, num_segments=N)
    alpha = alpha / denom[dst]
    msg = alpha[:, :, None] * feat[src]                       # (E, H, C)
    out = jax.ops.segment_sum(msg, dst, num_segments=N)       # (N, H, C)
    out = out.mean(axis=1) + p["bias"]
    if p["apply_prelu"]:
        out = jnp.where(out >= 0, out, p["prelu_a"][0] * out)
    return out


def ref_forward(params, x, edge_index, negative_slope=0.0):
    h = x
    for p in params:
        h = ref_layer(h, p, edge_index, negative_slope)
    return h


# ----------------------------------- main ------------------------------------ #
if __name__ == "__main__":
    key = jax.random.PRNGKey(0)
    N, in_dim, num_hidden, out_dim = 256, 64, 32, 8
    nhead, nhead_out = 1, 1                 # GAT defaults
    negative_slope = 0.0                    # GAT passes negative_slope=False -> 0.0
    # Dst-row tile.  At this tiny N=256, TM=64 gives a 4-step "parallel" grid so each
    # v7x core pipelines 2 steps (TM=128 would leave one exposed step per core).
    # For real N use TM=128 on v5e (matches 128x128 MXU) and TM=256 on v6e/v7x.
    TM = 64

    k_x, k_p = jax.random.split(key)
    x = jax.random.normal(k_x, (N, in_dim), dtype=jnp.float32)

    # deterministic edge_index [2, E]: ring edges i->(i+1)%N and i->(i+5)%N
    src = np.concatenate([np.arange(N), np.arange(N)])
    dst = np.concatenate([(np.arange(N) + 1) % N, (np.arange(N) + 5) % N])
    edge_index = jnp.asarray(np.stack([src, dst]), dtype=jnp.int32)

    # dense int8 adjacency mask adj[dst, src] = 1 (glue, plain JAX) — int8 keeps
    # adjacency HBM traffic 4x smaller than f32.
    adj_i8 = jnp.zeros((N, N), jnp.int8).at[edge_index[1], edge_index[0]].set(1)

    params = init_gat_params(k_p, in_dim, num_hidden, out_dim, nhead, nhead_out)

    out = gat_forward(params, x, adj_i8, negative_slope, tile_m=TM)
    out = jax.block_until_ready(out)

    ref = ref_forward(params, x, edge_index, negative_slope)
    # Tolerance relaxed because the projection + aggregation matmuls feed bf16 operands
    # to the MXU (f32 accumulation); the reference is pure f32.
    np.testing.assert_allclose(np.asarray(out), np.asarray(ref), rtol=5e-2, atol=1e-1)
    assert out.shape == (N, out_dim)

    print("KERNEL_OK")
</pallas_src>

<mosaic_0001>
module attributes {stable_mosaic.version = 11 : i64} {
  func.func @_project_kernel(%arg0: i32, %arg1: memref<64x64xf32, #tpu.memory_space<vmem>>, %arg2: memref<64x128xbf16, #tpu.memory_space<vmem>>, %arg3: memref<64x128xf32, #tpu.memory_space<vmem>>, %arg4: memref<64x128xbf16, #tpu.memory_space<vmem>>, %arg5: memref<64x128xf32, #tpu.memory_space<vmem>>) attributes {dimension_semantics = [#tpu.dimension_semantics<parallel>], iteration_bounds = array<i64: 4>, scalar_prefetch = 0 : i64, scratch_operands = 0 : i64, tpu.core_type = #tpu.core_type<tc>, window_params = [{transform_indices = @transform_0, window_bounds = array<i64: 64, 64>}, {pipeline_mode = #tpu.pipeline_mode<synchronous>, transform_indices = @transform_1, window_bounds = array<i64: 64, 128>}, {pipeline_mode = #tpu.pipeline_mode<synchronous>, transform_indices = @transform_2, window_bounds = array<i64: 64, 128>}, {transform_indices = @transform_3, window_bounds = array<i64: 64, 128>}, {transform_indices = @transform_4, window_bounds = array<i64: 64, 128>}]} {
    %c0 = arith.constant 0 : index
    %c0_0 = arith.constant 0 : index
    %0 = vector.load %arg1[%c0, %c0_0] : memref<64x64xf32, #tpu.memory_space<vmem>>, vector<64x64xf32>
    %1 = arith.truncf %0 : vector<64x64xf32> to vector<64x64xbf16>
    %c0_1 = arith.constant 0 : index
    %c0_2 = arith.constant 0 : index
    %2 = vector.load %arg2[%c0_1, %c0_2] : memref<64x128xbf16, #tpu.memory_space<vmem>>, vector<64x128xbf16>
    %cst = arith.constant dense<0.000000e+00> : vector<64x128xf32>
    %3 = tpu.matmul %1, %2, %cst {dimension_numbers = #tpu.dot_dimension_numbers<[1], [0], [0], [1], [0, 0, 1, 1], [], []>} : vector<64x64xbf16>, vector<64x128xbf16>, vector<64x128xf32> -> vector<64x128xf32>
    %4 = arith.truncf %3 : vector<64x128xf32> to vector<64x128xbf16>
    %c0_3 = arith.constant 0 : index
    %c0_4 = arith.constant 0 : index
    %5 = vector.load %arg4[%c0_3, %c0_4] : memref<64x128xbf16, #tpu.memory_space<vmem>>, vector<64x128xbf16>
    tpu.vector_store %arg4[%c0_3, %c0_4], %4 {strides = array<i32>} : memref<64x128xbf16, #tpu.memory_space<vmem>>, vector<64x128xbf16>,
    %c0_5 = arith.constant 0 : index
    %c0_6 = arith.constant 0 : index
    %6 = vector.load %arg1[%c0_5, %c0_6] : memref<64x64xf32, #tpu.memory_space<vmem>>, vector<64x64xf32>
    %c0_7 = arith.constant 0 : index
    %c0_8 = arith.constant 0 : index
    %7 = vector.load %arg3[%c0_7, %c0_8] : memref<64x128xf32, #tpu.memory_space<vmem>>, vector<64x128xf32>
    %cst_9 = arith.constant dense<0.000000e+00> : vector<64x128xf32>
    %8 = tpu.matmul %6, %7, %cst_9 {dimension_numbers = #tpu.dot_dimension_numbers<[1], [0], [0], [1], [0, 0, 1, 1], [], []>} : vector<64x64xf32>, vector<64x128xf32>, vector<64x128xf32> -> vector<64x128xf32>
    %c0_10 = arith.constant 0 : index
    %c0_11 = arith.constant 0 : index
    %9 = vector.load %arg5[%c0_10, %c0_11] : memref<64x128xf32, #tpu.memory_space<vmem>>, vector<64x128xf32>
    tpu.vector_store %arg5[%c0_10, %c0_11], %8 {strides = array<i32>} : memref<64x128xf32, #tpu.memory_space<vmem>>, vector<64x128xf32>,
    return
  }
  func.func @transform_0(%arg0: i32) -> (i32, i32) {
    %c0_i32 = arith.constant 0 : i32
    %c0_i32_0 = arith.constant 0 : i32
    return %arg0, %c0_i32 : i32, i32
  }
  func.func @transform_1(%arg0: i32) -> (i32, i32) {
    %c0_i32 = arith.constant 0 : i32
    %c0_i32_0 = arith.constant 0 : i32
    %c0_i32_1 = arith.constant 0 : i32
    return %c0_i32, %c0_i32_0 : i32, i32
  }
  func.func @transform_2(%arg0: i32) -> (i32, i32) {
    %c0_i32 = arith.constant 0 : i32
    %c0_i32_0 = arith.constant 0 : i32
    %c0_i32_1 = arith.constant 0 : i32
    return %c0_i32, %c0_i32_0 : i32, i32
  }
  func.func @transform_3(%arg0: i32) -> (i32, i32) {
    %c0_i32 = arith.constant 0 : i32
    %c0_i32_0 = arith.constant 0 : i32
    return %arg0, %c0_i32 : i32, i32
  }
  func.func @transform_4(%arg0: i32) -> (i32, i32) {
    %c0_i32 = arith.constant 0 : i32
    %c0_i32_0 = arith.constant 0 : i32
    return %arg0, %c0_i32 : i32, i32
  }
}

</mosaic_0001>

<llo_original>
// kernel: tpu_custom_call.1
$region0: #{tpu_custom_call.1}
  #allocation0 [shape = 'u32[]', space=smem, size = 0x4, offset = 0x4, fixed_abs, tag = 'smem constant byte address 0x4 - core index']
  #allocation1 [shape = 'u32[144,128]{1,0:T(1,128)}', space=vmem, size = 0x12000, scoped, tag = 'internal scratch']
  %s0 = inlined_call_operand.vmem [shape: f32[256,64], index: 0, kind: input, shape index: {}]
  %s1 = inlined_call_operand.vmem [shape: bf16[64,128], index: 1, kind: input, shape index: {}]
  %s2 = inlined_call_operand.vmem [shape: f32[64,128], index: 2, kind: input, shape index: {}]
  %s3 = inlined_call_operand.hbm [shape: bf16[256,128], index: 3, kind: output, shape index: {0}]
  %s4 = inlined_call_operand.hbm [shape: f32[256,128], index: 4, kind: output, shape index: {1}]
  %5 = xla_tuple %s3, %s4
  %s6 = sld [smem:[#allocation0]]
  $region53: #{tpu_custom_call.1} parent=0
    _
  %s8 = ssub.s32 1, %s6
  %s9 = scalar_select 0, %s8, %s6
  $region1: #{tpu_custom_call.1} parent=0
    #allocation2 [shape = 'u8[32768]{0}', space=vmem, size = 0x8000, scoped, tag = 'output window, operand 0']
    #allocation3 [shape = 's32[2]{0}', space=sflag, size = 0x8, scoped, tag = 'scoped memory for tpu_custom_call.1']
    #allocation4 [shape = 'u8[65536]{0}', space=vmem, size = 0x10000, scoped, tag = 'output window, operand 1']
    #allocation5 [shape = 's32[2]{0}', space=sflag, size = 0x8, scoped, tag = 'scoped memory for tpu_custom_call.1']
    %10 = vsyncpa [#allocation3], 0
    %s11 = scalar_lea.sflag [#allocation3], 1
    %12 = vsyncpa %s11, 0
    %13 = vsyncpa [#allocation5], 0
    %s14 = scalar_lea.sflag [#allocation5], 1
    %15 = vsyncpa %s14, 0
    loop: start=0, step=1, limit=6
    $region2: #{tpu_custom_call.1} parent=1 // loop_pre_header
      _
    $region3: #{tpu_custom_call.1} parent=1 // loop_header
      %s17 = sphi 0, %s21
      %p18 = scmp.ge.s32.totalorder %s17, 6
      %s27 = sphi 0, %s29
      %s30 = sphi 0, %s27
      %s31 = sphi 0, %s30
      %s47 = sphi 0, %s31
      %s51 = sphi 0, %s51
      %s53 = sphi 0, %s51
      %s54 = sphi 0, %s53
      %s68 = sphi 0, %s54
      %s72 = sphi 0, %s72
      %s74 = sphi 0, %s72
      %s75 = sphi 0, %s74
      %s89 = sphi 0, %s75
      %s95 = sphi 0, %s97
      %s98 = sphi 0, %s95
      %s99 = sphi 0, %s98
      %s115 = sphi 0, %s99
      %s121 = sphi 0, %s123
      %s124 = sphi 0, %s121
      %s125 = sphi 0, %s124
      %s141 = sphi 0, %s125
    $region4: #{tpu_custom_call.1} parent=1 // loop_header_branch
      %20 = sbr.rel (%p18) target = $region8
    $region5: #{tpu_custom_call.1} parent=1 // loop_body
      %s22 = ssub.s32 %s17, 1
      %s23 = ssub.s32 %s17, 2
      %s24 = sadd.s32 %s17, 1
      %s25 = ssub.s32 %s17, %s24
      %p26 = scmp.eq.s32.totalorder %s25, 0
      %s28 = sadd.s32 %s27, 1
      %s29 = scalar_select %p26, %s27, %s28
      %p32 = pneg %p26
      %p33 = scmp.eq.s32.totalorder %s17, 3
      %p34 = por %p32, %p33
      %p35 = scmp.ne.s32.totalorder %s27, %s30
      %p36 = scmp.eq.s32.totalorder %s17, 0
      %p37 = por %p35, %p36
      %p38 = scmp.ne.s32.totalorder %s27, %s30
      %p39 = scmp.eq.s32.totalorder %s22, 3
      %p40 = por %p38, %p39
      %p41 = scmp.ne.s32.totalorder %s30, %s31
      %p42 = scmp.eq.s32.totalorder %s22, 0
      %p43 = por %p41, %p42
      %p44 = scmp.ne.s32.totalorder %s30, %s31
      %p45 = scmp.eq.s32.totalorder %s23, 3
      %p46 = por %p44, %p45
      %p48 = scmp.ne.s32.totalorder %s31, %s47
      %p49 = scmp.eq.s32.totalorder %s23, 0
      %p50 = por %p48, %p49
      %s52 = sadd.s32 %s51, 1
      %p55 = scmp.eq.s32.totalorder %s17, 3
      %p56 = scmp.ne.s32.totalorder %s51, %s53
      %p57 = scmp.eq.s32.totalorder %s17, 0
      %p58 = por %p56, %p57
      %p59 = scmp.ne.s32.totalorder %s51, %s53
      %p60 = scmp.eq.s32.totalorder %s22, 3
      %p61 = por %p59, %p60
      %p62 = scmp.ne.s32.totalorder %s53, %s54
      %p63 = scmp.eq.s32.totalorder %s22, 0
      %p64 = por %p62, %p63
      %p65 = scmp.ne.s32.totalorder %s53, %s54
      %p66 = scmp.eq.s32.totalorder %s23, 3
      %p67 = por %p65, %p66
      %p69 = scmp.ne.s32.totalorder %s54, %s68
      %p70 = scmp.eq.s32.totalorder %s23, 0
      %p71 = por %p69, %p70
      %s73 = sadd.s32 %s72, 1
      %p76 = scmp.eq.s32.totalorder %s17, 3
      %p77 = scmp.ne.s32.totalorder %s72, %s74
      %p78 = scmp.eq.s32.totalorder %s17, 0
      %p79 = por %p77, %p78
      %p80 = scmp.ne.s32.totalorder %s72, %s74
      %p81 = scmp.eq.s32.totalorder %s22, 3
      %p82 = por %p80, %p81
      %p83 = scmp.ne.s32.totalorder %s74, %s75
      %p84 = scmp.eq.s32.totalorder %s22, 0
      %p85 = por %p83, %p84
      %p86 = scmp.ne.s32.totalorder %s74, %s75
      %p87 = scmp.eq.s32.totalorder %s23, 3
      %p88 = por %p86, %p87
      %p90 = scmp.ne.s32.totalorder %s75, %s89
      %p91 = scmp.eq.s32.totalorder %s23, 0
      %p92 = por %p90, %p91
      %s93 = ssub.s32 %s17, %s24
      %p94 = scmp.eq.s32.totalorder %s93, 0
      %s96 = sadd.s32 %s95, 1
      %s97 = scalar_select %p94, %s95, %s96
      %p100 = pneg %p94
      %p101 = scmp.eq.s32.totalorder %s17, 3
      %p102 = por %p100, %p101
      %p103 = scmp.ne.s32.totalorder %s95, %s98
      %p104 = scmp.eq.s32.totalorder %s17, 0
      %p105 = por %p103, %p104
      %p106 = scmp.ne.s32.totalorder %s95, %s98
      %p107 = scmp.eq.s32.totalorder %s22, 3
      %p108 = por %p106, %p107
      %p109 = scmp.ne.s32.totalorder %s98, %s99
      %p110 = scmp.eq.s32.totalorder %s22, 0
      %p111 = por %p109, %p110
      %p112 = scmp.ne.s32.totalorder %s98, %s99
      %p113 = scmp.eq.s32.totalorder %s23, 3
      %p114 = por %p112, %p113
      %p116 = scmp.ne.s32.totalorder %s99, %s115
      %p117 = scmp.eq.s32.totalorder %s23, 0
      %p118 = por %p116, %p117
      %s119 = ssub.s32 %s17, %s24
      %p120 = scmp.eq.s32.totalorder %s119, 0
      %s122 = sadd.s32 %s121, 1
      %s123 = scalar_select %p120, %s121, %s122
      %p126 = pneg %p120
      %p127 = scmp.eq.s32.totalorder %s17, 3
      %p128 = por %p126, %p127
      %p129 = scmp.ne.s32.totalorder %s121, %s124
      %p130 = scmp.eq.s32.totalorder %s17, 0
      %p131 = por %p129, %p130
      %p132 = scmp.ne.s32.totalorder %s121, %s124
      %p133 = scmp.eq.s32.totalorder %s22, 3
      %p134 = por %p132, %p133
      %p135 = scmp.ne.s32.totalorder %s124, %s125
      %p136 = scmp.eq.s32.totalorder %s22, 0
      %p137 = por %p135, %p136
      %p138 = scmp.ne.s32.totalorder %s124, %s125
      %p139 = scmp.eq.s32.totalorder %s23, 3
      %p140 = por %p138, %p139
      %p142 = scmp.ne.s32.totalorder %s125, %s141
      %p143 = scmp.eq.s32.totalorder %s23, 0
      %p144 = por %p142, %p143
      %p145 = scmp.le.s32.totalorder 1, %s17
      %p146 = scmp.lt.s32.totalorder %s17, 5
      %p147 = pnand %p145, %p146
      %p148 = pneg %p147
      // Predicated region
      $region9: #{tpu_custom_call.1} parent=5 // pred_check
        _
      $region10: #{tpu_custom_call.1} parent=5 // pred_check_branch
        %150 = sbr.rel (%p147) target = $region12
      $region11: #{tpu_custom_call.1} parent=5 // pred_region
        %s151 = ssub.s32 %s17, 1
        // Predicated region
        $region13: #{tpu_custom_call.1} parent=11 // pred_check
          %p152 = pneg %p64
        $region14: #{tpu_custom_call.1} parent=11 // pred_check_branch
          %154 = sbr.rel (%p152) target = $region16
        $region15: #{tpu_custom_call.1} parent=11 // pred_region
          _
        $region16: #{tpu_custom_call.1} parent=11 // pred_fallthru
          _
        // Predicated region
        $region17: #{tpu_custom_call.1} parent=11 // pred_check
          %p155 = pneg %p85
        $region18: #{tpu_custom_call.1} parent=11 // pred_check_branch
          %157 = sbr.rel (%p155) target = $region20
        $region19: #{tpu_custom_call.1} parent=11 // pred_region
          _
        $region20: #{tpu_custom_call.1} parent=11 // pred_fallthru
          _
      $region12: #{tpu_custom_call.1} parent=5 // pred_fallthru
        _
      %p158 = scmp.lt.s32.totalorder %s17, 4
      // Predicated region
      $region21: #{tpu_custom_call.1} parent=5 // pred_check
        %p159 = pneg %p158
      $region22: #{tpu_custom_call.1} parent=5 // pred_check_branch
        %161 = sbr.rel (%p159) target = $region24
      $region23: #{tpu_custom_call.1} parent=5 // pred_region
        // Predicated region
        $region25: #{tpu_custom_call.1} parent=23 // pred_check
          %p162 = pneg %p37
        $region26: #{tpu_custom_call.1} parent=23 // pred_check_branch
          %164 = sbr.rel (%p162) target = $region28
        $region27: #{tpu_custom_call.1} parent=23 // pred_region
          %s165 = smul.u32 8, %s17
          %p166 = scmp.lt.s32.totalorder %s165, 31
          %s167 = scalar_select %p166, %s165, 31
          %s168 = smul.addr %s167, 8
          %s169 = scalar_lea.vmem %s0, %s168
          %s170 = smul.u32 8, %s17
        $region28: #{tpu_custom_call.1} parent=23 // pred_fallthru
          _
      $region24: #{tpu_custom_call.1} parent=5 // pred_fallthru
        _
      %p171 = scmp.le.s32.totalorder 1, %s17
      %p172 = scmp.lt.s32.totalorder %s17, 5
      %p173 = pnand %p171, %p172
      %p174 = pneg %p173
      // Predicated region
      $region29: #{tpu_custom_call.1} parent=5 // pred_check
        _
      $region30: #{tpu_custom_call.1} parent=5 // pred_check_branch
        %176 = sbr.rel (%p173) target = $region32
      $region31: #{tpu_custom_call.1} parent=5 // pred_region
        %s177 = ssub.s32 %s17, 1
        %s178 = smul.u32 8, %s22
        %p179 = scmp.lt.s32.totalorder %s178, 31
        %s180 = scalar_select %p179, %s178, 31
        %s181 = smul.addr %s180, 8
        %s182 = scalar_lea.vmem %s0, %s181
        %p183 = pneg %p43
        %p184 = pneg %p40
        %p185 = pneg %p64
        %p186 = pneg %p61
        %p187 = pneg %p85
        %p188 = pneg %p82
        %p189 = pneg %p111
        %p190 = pneg %p108
        %s191 = sand.u32 %s98, 1
        %s192 = scalar_lea.sflag [#allocation3], %s191
        %s193 = sand.u32 %s98, 1
        %s194 = smul.addr %s193, 32
        %s195 = scalar_lea.vmem [#allocation2], %s194
        %p196 = pneg %p137
        %p197 = pneg %p134
        %s198 = sand.u32 %s124, 1
        %s199 = scalar_lea.sflag [#allocation5], %s198
        %s200 = sand.u32 %s124, 1
        %s201 = smul.addr %s200, 64
        %s202 = scalar_lea.vmem [#allocation4], %s201
        %s203 = smul.u32 8, %s22
        %p204 = scmp.lt.s32.totalorder %s203, 31
        %s205 = scalar_select %p204, %s203, 31
        %s206 = smul.addr %s205, 8
        %s207 = scalar_lea.vmem %s0, %s206
        %s208 = smul.u32 8, %s22
        %s209 = smul.u32 8, %s22
        %s210 = smul.u32 8, %s22
        %v212 = vld [vmem:[%s207] sm:$0xff]
        %v213 = vld [vmem:[%s207 + $0x8] sm:$0xff]
        %v214 = vld [vmem:[%s207 + $0x10] sm:$0xff]
        %v215 = vld [vmem:[%s207 + $0x18] sm:$0xff]
        %v216 = vld [vmem:[%s207 + $0x20] sm:$0xff]
        %v217 = vld [vmem:[%s207 + $0x28] sm:$0xff]
        %v218 = vld [vmem:[%s207 + $0x30] sm:$0xff]
        %v219 = vld [vmem:[%s207 + $0x38] sm:$0xff]
        %v220 = vpack.c.bf16 %v213, %v212
        %v221 = vpack.c.bf16 %v215, %v214
        %v222 = vpack.c.bf16 %v217, %v216
        %v223 = vpack.c.bf16 %v219, %v218
        %v224 = vld [vmem:[%s1] sm:$0xf]
        %v225 = vld [vmem:[%s1 + $0x4] sm:$0xf]
        %v226 = vld [vmem:[%s1 + $0x8] sm:$0xf]
        %v227 = vld [vmem:[%s1 + $0xc] sm:$0xf]
        %v228 = vld [vmem:[%s1 + $0x10] sm:$0xf]
        %v229 = vld [vmem:[%s1 + $0x14] sm:$0xf]
        %v230 = vld [vmem:[%s1 + $0x18] sm:$0xf]
        %v231 = vld [vmem:[%s1 + $0x1c] sm:$0xf]
        %v240 = vunpack.c.l.b16 %v224
        %v241 = vunpack.c.l.b16 %v225
        %v242 = vunpack.c.l.b16 %v226
        %v243 = vunpack.c.l.b16 %v227
        %v244 = vunpack.c.l.b16 %v228
        %v245 = vunpack.c.l.b16 %v229
        %v246 = vunpack.c.l.b16 %v230
        %v247 = vunpack.c.l.b16 %v231
        %v248 = vpack.c.b16 %v241, %v240
        %v249 = vpack.c.b16 %v243, %v242
        %v250 = vpack.c.b16 %v245, %v244
        %v251 = vpack.c.b16 %v247, %v246
        %vm256 = vcmask 523264
        %v258 = vsel %vm256, %v220, 0
        %v261 = vsel %vm256, %v221, 0
        %v264 = vsel %vm256, %v222, 0
        %v267 = vsel %vm256, %v223, 0
        %269 = vmatprep.subr.bf16.mxu0 0
        %270 = vmatpush1.bf16.msra.mxu0 0
        %271 = vmatprep.subr.bf16.mxu0 0
        %272 = vmatpush1.bf16.msra.mxu0 0
        %273 = vmatprep.subr.bf16.mxu0 0
        %274 = vmatpush1.bf16.msra.mxu0 0
        %275 = vmatprep.subr.bf16.mxu0 0
        %276 = vmatpush1.bf16.msra.mxu0 0
        %277 = vmatprep.subr.bf16.mxu0 0
        %278 = vmatpush1.bf16.msra.mxu0 %v251
        %279 = vmatprep.subr.bf16.mxu0 0
        %280 = vmatpush1.bf16.msra.mxu0 %v250
        %281 = vmatprep.subr.bf16.mxu0 0
        %282 = vmatpush1.bf16.msra.mxu0 %v249
        %283 = vmatprep.subr.bf16.mxu0 0
        %284 = vmatpush1.bf16.msra.mxu0 %v248
        %285 = vmatprep.subr.bf16.mxu0 0
        %286 = vmatpush2.bf16.msra.mxu0 0
        %287 = vmatprep.subr.bf16.mxu0 0
        %288 = vmatpush2.bf16.msra.mxu0 0
        %289 = vmatprep.subr.bf16.mxu0 0
        %290 = vmatpush2.bf16.msra.mxu0 0
        %291 = vmatprep.subr.bf16.mxu0 0
        %292 = vmatpush2.bf16.msra.mxu0 0
        %293 = vmatprep.subr.bf16.mxu0 0
        %294 = vmatpush2.bf16.msra.mxu0 0
        %295 = vmatprep.subr.bf16.mxu0 0
        %296 = vmatpush2.bf16.msra.mxu0 0
        %297 = vmatprep.subr.bf16.mxu0 0
        %298 = vmatpush2.bf16.msra.mxu0 0
        %299 = vmatprep.subr.bf16.mxu0 0
        %300 = vmatpush2.bf16.msra.mxu0 0
        %301 = vmatprep.mubr.bf16.mxu0 0
        %302 = vmatmul.mubr.bf16.gmra.mxu0 %v258
        %v303 = vpop.f32.mrf.mxu0
        %v304 = vadd.f32 0.0, %v303
        %v305 = vpop.f32.mrf.mxu0
        %v306 = vpop.f32.mrf.mxu0
        %v307 = vadd.f32 0.0, %v306
        %v308 = vpop.f32.mrf.mxu0
        %309 = vmatprep.mubr.bf16.mxu0 0
        %310 = vmatmul.mubr.bf16.gmra.mxu0 %v261
        %v311 = vpop.f32.mrf.mxu0
        %v312 = vadd.f32 0.0, %v311
        %v313 = vpop.f32.mrf.mxu0
        %v314 = vpop.f32.mrf.mxu0
        %v315 = vadd.f32 0.0, %v314
        %v316 = vpop.f32.mrf.mxu0
        %317 = vmatprep.mubr.bf16.mxu0 0
        %318 = vmatmul.mubr.bf16.gmra.mxu0 %v264
        %v319 = vpop.f32.mrf.mxu0
        %v320 = vadd.f32 0.0, %v319
        %v321 = vpop.f32.mrf.mxu0
        %v322 = vpop.f32.mrf.mxu0
        %v323 = vadd.f32 0.0, %v322
        %v324 = vpop.f32.mrf.mxu0
        %325 = vmatprep.mubr.bf16.mxu0 0
        %326 = vmatmul.mubr.bf16.gmra.mxu0 %v267
        %v327 = vpop.f32.mrf.mxu0
        %v328 = vadd.f32 0.0, %v327
        %v329 = vpop.f32.mrf.mxu0
        %v330 = vpop.f32.mrf.mxu0
        %v331 = vadd.f32 0.0, %v330
        %v332 = vpop.f32.mrf.mxu0
        %333 = vdwg.mxu0
        %v334 = vpack.c.bf16 %v307, %v304
        %v335 = vpack.c.bf16 %v315, %v312
        %v336 = vpack.c.bf16 %v323, %v320
        %v337 = vpack.c.bf16 %v331, %v328
        %v342 = vunpack.c.l.b16 %v334
        %v343 = vunpack.c.h.b16 %v334
        %v344 = vunpack.c.l.b16 %v335
        %v345 = vunpack.c.h.b16 %v335
        %v346 = vunpack.c.l.b16 %v336
        %v347 = vunpack.c.h.b16 %v336
        %v348 = vunpack.c.l.b16 %v337
        %v349 = vunpack.c.h.b16 %v337
        %v350 = vpack.c.b16 %v342, %v342
        %v351 = vpack.c.b16 %v343, %v343
        %v352 = vpack.c.b16 %v344, %v344
        %v353 = vpack.c.b16 %v345, %v345
        %v354 = vpack.c.b16 %v346, %v346
        %v355 = vpack.c.b16 %v347, %v347
        %v356 = vpack.c.b16 %v348, %v348
        %v357 = vpack.c.b16 %v349, %v349
        %366 = vst [vmem:[%s195] sm:$0xf] %v350
        %367 = vst [vmem:[%s195 + $0x4] sm:$0xf] %v351
        %368 = vst [vmem:[%s195 + $0x8] sm:$0xf] %v352
        %369 = vst [vmem:[%s195 + $0xc] sm:$0xf] %v353
        %370 = vst [vmem:[%s195 + $0x10] sm:$0xf] %v354
        %371 = vst [vmem:[%s195 + $0x14] sm:$0xf] %v355
        %372 = vst [vmem:[%s195 + $0x18] sm:$0xf] %v356
        %373 = vst [vmem:[%s195 + $0x1c] sm:$0xf] %v357
        %v374 = vld [vmem:[%s207] sm:$0xff]
        %v375 = vld [vmem:[%s207 + $0x8] sm:$0xff]
        %v376 = vld [vmem:[%s207 + $0x10] sm:$0xff]
        %v377 = vld [vmem:[%s207 + $0x18] sm:$0xff]
        %v378 = vld [vmem:[%s207 + $0x20] sm:$0xff]
        %v379 = vld [vmem:[%s207 + $0x28] sm:$0xff]
        %v380 = vld [vmem:[%s207 + $0x30] sm:$0xff]
        %v381 = vld [vmem:[%s207 + $0x38] sm:$0xff]
        %v382 = vld [vmem:[%s2] sm:$0xff]
        %v383 = vld [vmem:[%s2 + $0x8] sm:$0xff]
        %v384 = vld [vmem:[%s2 + $0x10] sm:$0xff]
        %v385 = vld [vmem:[%s2 + $0x18] sm:$0xff]
        %v386 = vld [vmem:[%s2 + $0x20] sm:$0xff]
        %v387 = vld [vmem:[%s2 + $0x28] sm:$0xff]
        %v388 = vld [vmem:[%s2 + $0x30] sm:$0xff]
        %v389 = vld [vmem:[%s2 + $0x38] sm:$0xff]
        %v391 = vsel %vm256, %v374, 0
        %v394 = vsel %vm256, %v375, 0
        %v397 = vsel %vm256, %v376, 0
        %v400 = vsel %vm256, %v377, 0
        %v403 = vsel %vm256, %v378, 0
        %v406 = vsel %vm256, %v379, 0
        %v409 = vsel %vm256, %v380, 0
        %v412 = vsel %vm256, %v381, 0
        %414 = vmatprep.subr.mxu0 0.0
        %415 = vmatpush1.msra.mxu0 0.0
        %416 = vmatprep.subr.mxu0 0.0
        %417 = vmatpush1.msra.mxu0 0.0
        %418 = vmatprep.subr.mxu0 0.0
        %419 = vmatpush1.msra.mxu0 0.0
        %420 = vmatprep.subr.mxu0 0.0
        %421 = vmatpush1.msra.mxu0 0.0
        %422 = vmatprep.subr.mxu0 0.0
        %423 = vmatpush1.msra.mxu0 0.0
        %424 = vmatprep.subr.mxu0 0.0
        %425 = vmatpush1.msra.mxu0 0.0
        %426 = vmatprep.subr.mxu0 0.0
        %427 = vmatpush1.msra.mxu0 0.0
        %428 = vmatprep.subr.mxu0 0.0
        %429 = vmatpush1.msra.mxu0 0.0
        %430 = vmatprep.subr.mxu0 0.0
        %431 = vmatpush1.msra.mxu0 %v389
        %432 = vmatprep.subr.mxu0 0.0
        %433 = vmatpush1.msra.mxu0 %v388
        %434 = vmatprep.subr.mxu0 0.0
        %435 = vmatpush1.msra.mxu0 %v387
        %436 = vmatprep.subr.mxu0 0.0
        %437 = vmatpush1.msra.mxu0 %v386
        %438 = vmatprep.subr.mxu0 0.0
        %439 = vmatpush1.msra.mxu0 %v385
        %440 = vmatprep.subr.mxu0 0.0
        %441 = vmatpush1.msra.mxu0 %v384
        %442 = vmatprep.subr.mxu0 0.0
        %443 = vmatpush1.msra.mxu0 %v383
        %444 = vmatprep.subr.mxu0 0.0
        %445 = vmatpush1.msra.mxu0 %v382
        %446 = vmatprep.subr.mxu0 0.0
        %447 = vmatpush2.msra.mxu0 0.0
        %448 = vmatprep.subr.mxu0 0.0
        %449 = vmatpush2.msra.mxu0 0.0
        %450 = vmatprep.subr.mxu0 0.0
        %451 = vmatpush2.msra.mxu0 0.0
        %452 = vmatprep.subr.mxu0 0.0
        %453 = vmatpush2.msra.mxu0 0.0
        %454 = vmatprep.subr.mxu0 0.0
        %455 = vmatpush2.msra.mxu0 0.0
        %456 = vmatprep.subr.mxu0 0.0
        %457 = vmatpush2.msra.mxu0 0.0
        %458 = vmatprep.subr.mxu0 0.0
        %459 = vmatpush2.msra.mxu0 0.0
        %460 = vmatprep.subr.mxu0 0.0
        %461 = vmatpush2.msra.mxu0 0.0
        %462 = vmatprep.subr.mxu0 0.0
        %463 = vmatpush2.msra.mxu0 0.0
        %464 = vmatprep.subr.mxu0 0.0
        %465 = vmatpush2.msra.mxu0 0.0
        %466 = vmatprep.subr.mxu0 0.0
        %467 = vmatpush2.msra.mxu0 0.0
        %468 = vmatprep.subr.mxu0 0.0
        %469 = vmatpush2.msra.mxu0 0.0
        %470 = vmatprep.subr.mxu0 0.0
        %471 = vmatpush2.msra.mxu0 0.0
        %472 = vmatprep.subr.mxu0 0.0
        %473 = vmatpush2.msra.mxu0 0.0
        %474 = vmatprep.subr.mxu0 0.0
        %475 = vmatpush2.msra.mxu0 0.0
        %476 = vmatprep.subr.mxu0 0.0
        %477 = vmatpush2.msra.mxu0 0.0
        %478 = vmatprep.mubr.f32.mxu0 0.0
        %479 = vmatmul.mubr.f32.gmra.mxu0 %v391
        %v480 = vpop.f32.mrf.mxu0
        %v481 = vadd.f32 0.0, %v480
        %v482 = vpop.f32.mrf.mxu0
        %483 = vmatprep.mubr.f32.mxu0 0.0
        %484 = vmatmul.mubr.f32.gmra.mxu0 %v394
        %v485 = vpop.f32.mrf.mxu0
        %v486 = vadd.f32 0.0, %v485
        %v487 = vpop.f32.mrf.mxu0
        %488 = vmatprep.mubr.f32.mxu0 0.0
        %489 = vmatmul.mubr.f32.gmra.mxu0 %v397
        %v490 = vpop.f32.mrf.mxu0
        %v491 = vadd.f32 0.0, %v490
        %v492 = vpop.f32.mrf.mxu0
        %493 = vmatprep.mubr.f32.mxu0 0.0
        %494 = vmatmul.mubr.f32.gmra.mxu0 %v400
        %v495 = vpop.f32.mrf.mxu0
        %v496 = vadd.f32 0.0, %v495
        %v497 = vpop.f32.mrf.mxu0
        %498 = vmatprep.mubr.f32.mxu0 0.0
        %499 = vmatmul.mubr.f32.gmra.mxu0 %v403
        %v500 = vpop.f32.mrf.mxu0
        %v501 = vadd.f32 0.0, %v500
        %v502 = vpop.f32.mrf.mxu0
        %503 = vmatprep.mubr.f32.mxu0 0.0
        %504 = vmatmul.mubr.f32.gmra.mxu0 %v406
        %v505 = vpop.f32.mrf.mxu0
        %v506 = vadd.f32 0.0, %v505
        %v507 = vpop.f32.mrf.mxu0
        %508 = vmatprep.mubr.f32.mxu0 0.0
        %509 = vmatmul.mubr.f32.gmra.mxu0 %v409
        %v510 = vpop.f32.mrf.mxu0
        %v511 = vadd.f32 0.0, %v510
        %v512 = vpop.f32.mrf.mxu0
        %513 = vmatprep.mubr.f32.mxu0 0.0
        %514 = vmatmul.mubr.f32.gmra.mxu0 %v412
        %v515 = vpop.f32.mrf.mxu0
        %v516 = vadd.f32 0.0, %v515
        %v517 = vpop.f32.mrf.mxu0
        %518 = vdwg.mxu0
        %519 = vst [vmem:[%s202] sm:$0xff] %v481
        %520 = vst [vmem:[%s202 + $0x8] sm:$0xff] %v486
        %521 = vst [vmem:[%s202 + $0x10] sm:$0xff] %v491
        %522 = vst [vmem:[%s202 + $0x18] sm:$0xff] %v496
        %523 = vst [vmem:[%s202 + $0x20] sm:$0xff] %v501
        %524 = vst [vmem:[%s202 + $0x28] sm:$0xff] %v506
        %525 = vst [vmem:[%s202 + $0x30] sm:$0xff] %v511
        %526 = vst [vmem:[%s202 + $0x38] sm:$0xff] %v516
        %s527 = sand.u32 %s98, 1
        %s528 = scalar_lea.sflag [#allocation3], %s527
        %s529 = sand.u32 %s98, 1
        %s530 = smul.addr %s529, 32
        %s531 = scalar_lea.vmem [#allocation2], %s530
        %s532 = sand.u32 %s124, 1
        %s533 = scalar_lea.sflag [#allocation5], %s532
        %s534 = sand.u32 %s124, 1
        %s535 = smul.addr %s534, 64
        %s536 = scalar_lea.vmem [#allocation4], %s535
        // Predicated region
        $region33: #{tpu_custom_call.1} parent=31 // pred_check
          %p537 = pneg %p108
        $region34: #{tpu_custom_call.1} parent=31 // pred_check_branch
          %539 = sbr.rel (%p537) target = $region36
        $region35: #{tpu_custom_call.1} parent=31 // pred_region
          %s540 = smul.u32 8, %s22
          %s542 = ssub.s32 512, 512
          %543 = vsyncadd %s528, %s542
          %s544 = smul.addr %s540, 64
          %s545 = scalar_lea.hbm %s3, %s544
          %s546 = sshll.u32 %s531, 4
          %s547 = int_to_ptr.vmem [resolvable:$true] %s546
          %552 = dma.vmem_to_hbm [thread:$0]  %s547, 512, %s545, %s528, 64, 64, 4
        $region36: #{tpu_custom_call.1} parent=31 // pred_fallthru
          _
        // Predicated region
        $region37: #{tpu_custom_call.1} parent=31 // pred_check
          %p553 = pneg %p134
        $region38: #{tpu_custom_call.1} parent=31 // pred_check_branch
          %555 = sbr.rel (%p553) target = $region40
        $region39: #{tpu_custom_call.1} parent=31 // pred_region
          %s556 = smul.u32 8, %s22
          %s558 = ssub.s32 1024, 1024
          %559 = vsyncadd %s533, %s558
          %s560 = smul.addr %s556, 128
          %s561 = scalar_lea.hbm %s4, %s560
          %s562 = sshll.u32 %s536, 4
          %s563 = int_to_ptr.vmem [resolvable:$true] %s562
          %568 = dma.vmem_to_hbm [thread:$0]  %s563, 1024, %s561, %s533, 128, 128, 8
        $region40: #{tpu_custom_call.1} parent=31 // pred_fallthru
          _
      $region32: #{tpu_custom_call.1} parent=5 // pred_fallthru
        _
      %p569 = scmp.le.s32.totalorder 2, %s17
      // Predicated region
      $region41: #{tpu_custom_call.1} parent=5 // pred_check
        %p570 = pneg %p569
      $region42: #{tpu_custom_call.1} parent=5 // pred_check_branch
        %572 = sbr.rel (%p570) target = $region44
      $region43: #{tpu_custom_call.1} parent=5 // pred_region
        %s573 = ssub.s32 %s17, 2
        // Predicated region
        $region45: #{tpu_custom_call.1} parent=43 // pred_check
          %p574 = pneg %p114
        $region46: #{tpu_custom_call.1} parent=43 // pred_check_branch
          %576 = sbr.rel (%p574) target = $region48
        $region47: #{tpu_custom_call.1} parent=43 // pred_region
          %s577 = sand.u32 %s99, 1
          %s578 = scalar_lea.sflag [#allocation3], %s577
          %s579 = sand.u32 %s99, 1
          %s580 = smul.addr %s579, 32
          %s581 = scalar_lea.vmem [#allocation2], %s580
          %582 = dma.done %s578, 512
        $region48: #{tpu_custom_call.1} parent=43 // pred_fallthru
          _
        // Predicated region
        $region49: #{tpu_custom_call.1} parent=43 // pred_check
          %p583 = pneg %p140
        $region50: #{tpu_custom_call.1} parent=43 // pred_check_branch
          %585 = sbr.rel (%p583) target = $region52
        $region51: #{tpu_custom_call.1} parent=43 // pred_region
          %s586 = sand.u32 %s125, 1
          %s587 = scalar_lea.sflag [#allocation5], %s586
          %s588 = sand.u32 %s125, 1
          %s589 = smul.addr %s588, 64
          %s590 = scalar_lea.vmem [#allocation4], %s589
          %591 = dma.done %s587, 1024
        $region52: #{tpu_custom_call.1} parent=43 // pred_fallthru
          _
      $region44: #{tpu_custom_call.1} parent=5 // pred_fallthru
        _
    $region6: #{tpu_custom_call.1} parent=1 // loop_footer
      %s21 = sadd.s32 1, %s17
    $region7: #{tpu_custom_call.1} parent=1 // loop_footer_branch
      %16 = sbr.rel target = $region3
    $region8: #{tpu_custom_call.1} parent=1 // loop_exit
      _
    %592 = vsyncpa [#allocation3], 1
    %s593 = scalar_lea.sflag [#allocation3], 1
    %594 = vsyncpa %s593, 1
    %595 = vsyncpa [#allocation5], 1
    %s596 = scalar_lea.sflag [#allocation5], 1
    %597 = vsyncpa %s596, 1

</llo_original>
